<compile_context>
chip_gen: v6e
topology: v6e:2x2x1
jax: 0.10.0
libtpu: 0.0.40
codegen_flags: <defaults>
</compile_context>

<pallas_src>
import jax
import jax.numpy as jnp
from jax.experimental import pallas as pl
from jax.experimental.pallas import tpu as pltpu

LANES = 128  # last dim maps to the 128-lane axis -> unmasked vst


def _round_up(v, m):
    return ((v + m - 1) // m) * m


def _sublane_multiple(dtype):
    # Minimum second-to-last tile dim: 8 for 4-byte, 16 for 2-byte, 32 for 1-byte.
    itemsize = jnp.dtype(dtype).itemsize
    return max(8, 32 // max(1, itemsize))


def _linreg_kernel(ab_ref, x_ref, o_ref):
    # ab_ref: (2,) f32 scalars in SMEM -> [a, b]; x_ref/o_ref: (tile_r, 128) VMEM tiles.
    a = ab_ref[0]
    b = ab_ref[1]
    y = a + b * x_ref[...].astype(jnp.float32)   # one VPU FMA per vreg, in f32
    o_ref[...] = y.astype(o_ref.dtype)


def pallas_linear_regression(a, b, x, *, tile_rows=8192):
    """y = a + b * x, scalar params broadcast elementwise over x."""
    orig_shape = x.shape
    total = x.size
    if total == 0:                    # empty input: nothing to compute
        return x

    # ---- Lane-dense view: flatten; pad ONLY the sub-128 lane tail if needed.
    rows = pl.cdiv(total, LANES)
    padded_total = rows * LANES
    needs_pad = padded_total != total

    x_flat = jnp.ravel(x)
    if needs_pad:
        x_flat = jnp.pad(x_flat, (0, padded_total - total))
    x2d = x_flat.reshape(rows, LANES)

    # ---- Tile the row axis (dtype-aware sublane multiple; partial last block OK).
    sub = _sublane_multiple(x.dtype)
    tile_r = max(sub, (int(tile_rows) // sub) * sub)
    if rows > 2 * sub:
        # Prefer >= 2 grid steps so v7x's two TensorCores both get work.
        tile_r = min(tile_r, _round_up(pl.cdiv(rows, 2), sub))
    if tile_r > rows:
        tile_r = rows                 # single full-extent block for tiny inputs
    num_tiles = pl.cdiv(rows, tile_r)

    # Single (2,) f32 scalar vector for SMEM (no downcast of the params).
    ab = jnp.concatenate([jnp.ravel(a), jnp.ravel(b)]).astype(jnp.float32)

    itemsize = jnp.dtype(x.dtype).itemsize
    cost = pl.CostEstimate(
        flops=2 * padded_total,
        transcendentals=0,
        bytes_accessed=2 * padded_total * itemsize,
    )

    y2d = pl.pallas_call(
        _linreg_kernel,
        out_shape=jax.ShapeDtypeStruct((rows, LANES), x.dtype),
        grid=(num_tiles,),
        in_specs=[
            pl.BlockSpec(memory_space=pltpu.MemorySpace.SMEM),   # ab scalars
            pl.BlockSpec((tile_r, LANES), lambda i: (i, 0)),     # x tile
        ],
        out_specs=pl.BlockSpec((tile_r, LANES), lambda i: (i, 0)),
        compiler_params=pltpu.CompilerParams(
            dimension_semantics=("parallel",),        # row tiles are independent
            vmem_limit_bytes=32 * 1024 * 1024,        # in+out double-buffered <= ~16 MiB
        ),
        cost_estimate=cost,
    )(ab, x2d)

    # Restore the caller's shape; slice only if a lane-tail pad was inserted.
    if needs_pad:
        return y2d.reshape(-1)[:total].reshape(orig_shape)
    return y2d.reshape(orig_shape)


if __name__ == "__main__":
    key = jax.random.PRNGKey(0)
    k_a, k_b, k_x, k_x2, k_x3 = jax.random.split(key, 5)

    # Deterministic parameter init (mirrors torch.randn(1) for a and b).
    a = jax.random.normal(k_a, (1,), dtype=jnp.float32)
    b = jax.random.normal(k_b, (1,), dtype=jnp.float32)

    # Input consistent with the reference script: np.random.rand(100, 1)
    x = jax.random.uniform(k_x, (100, 1), dtype=jnp.float32)
    y = jax.block_until_ready(pallas_linear_regression(a, b, x))
    assert y.shape == x.shape
    assert jnp.allclose(y, a + b * x, atol=1e-6, rtol=1e-6)

    # Lane-pad + multi-tile grid path (small tile_rows on purpose).
    x2 = jax.random.uniform(k_x2, (3000, 1), dtype=jnp.float32)
    y2 = jax.block_until_ready(pallas_linear_regression(a, b, x2, tile_rows=8))
    assert y2.shape == x2.shape
    assert jnp.allclose(y2, a + b * x2, atol=1e-6, rtol=1e-6)

    # No-pad path (size multiple of 128) exercising the >=2-tile megacore split.
    x3 = jax.random.uniform(k_x3, (32, 128), dtype=jnp.float32)
    y3 = jax.block_until_ready(pallas_linear_regression(a, b, x3))
    assert y3.shape == x3.shape
    assert jnp.allclose(y3, a + b * x3, atol=1e-6, rtol=1e-6)

    print("KERNEL_OK")
</pallas_src>

<mosaic_0001>
module attributes {stable_mosaic.version = 11 : i64} {
  func.func @_linreg_kernel(%arg0: i32, %arg1: memref<2xf32, #tpu.memory_space<smem>>, %arg2: memref<1x128xf32, #tpu.memory_space<vmem>>, %arg3: memref<1x128xf32, #tpu.memory_space<vmem>>) attributes {dimension_semantics = [#tpu.dimension_semantics<parallel>], iteration_bounds = array<i64: 1>, scalar_prefetch = 0 : i64, scratch_operands = 0 : i64, tpu.core_type = #tpu.core_type<tc>, window_params = [{transform_indices = @transform_0, window_bounds = array<i64: 2>}, {transform_indices = @transform_1, window_bounds = array<i64: 1, 128>}, {transform_indices = @transform_2, window_bounds = array<i64: 1, 128>}]} {
    %c0 = arith.constant 0 : index
    %0 = memref.load %arg1[%c0] : memref<2xf32, #tpu.memory_space<smem>>
    %c1 = arith.constant 1 : index
    %1 = memref.load %arg1[%c1] : memref<2xf32, #tpu.memory_space<smem>>
    %c0_0 = arith.constant 0 : index
    %c0_1 = arith.constant 0 : index
    %2 = vector.load %arg2[%c0_0, %c0_1] : memref<1x128xf32, #tpu.memory_space<vmem>>, vector<1x128xf32>
    %3 = vector.broadcast %1 : f32 to vector<1x128xf32>
    %4 = arith.mulf %3, %2 : vector<1x128xf32>
    %5 = vector.broadcast %0 : f32 to vector<1x128xf32>
    %6 = arith.addf %5, %4 : vector<1x128xf32>
    %c0_2 = arith.constant 0 : index
    %c0_3 = arith.constant 0 : index
    %7 = vector.load %arg3[%c0_2, %c0_3] : memref<1x128xf32, #tpu.memory_space<vmem>>, vector<1x128xf32>
    tpu.vector_store %arg3[%c0_2, %c0_3], %6 {strides = array<i32>} : memref<1x128xf32, #tpu.memory_space<vmem>>, vector<1x128xf32>,
    return
  }
  func.func @transform_0(%arg0: i32) -> i32 {
    %c0_i32 = arith.constant 0 : i32
    %c0_i32_0 = arith.constant 0 : i32
    return %c0_i32 : i32
  }
  func.func @transform_1(%arg0: i32) -> (i32, i32) {
    %c0_i32 = arith.constant 0 : i32
    %c0_i32_0 = arith.constant 0 : i32
    return %arg0, %c0_i32 : i32, i32
  }
  func.func @transform_2(%arg0: i32) -> (i32, i32) {
    %c0_i32 = arith.constant 0 : i32
    %c0_i32_0 = arith.constant 0 : i32
    return %arg0, %c0_i32 : i32, i32
  }
}

</mosaic_0001>

<llo_original>
// kernel: tpu_custom_call.1
$region0: #{tpu_custom_call.1}
  #allocation0 [shape = 'u32[]', space=smem, size = 0x4, offset = 0x4, fixed_abs, tag = 'smem constant byte address 0x4 - core index']
  #allocation1 [shape = 'u32[144,128]{1,0:T(1,128)}', space=vmem, size = 0x12000, scoped, tag = 'internal scratch']
  %s0 = inlined_call_operand.hbm [shape: f32[2], index: 0, kind: input, shape index: {}]
  %s1 = inlined_call_operand.vmem [shape: f32[1,128], index: 1, kind: input, shape index: {}]
  %s2 = inlined_call_operand.hbm [shape: f32[1,128], index: 2, kind: output, shape index: {}]
  %s3 = sld [smem:[#allocation0]]
  $region22: #{tpu_custom_call.1} parent=0
    _
  %s5 = ssub.s32 1, %s3
  %s6 = scalar_select 0, %s5, %s3
  $region1: #{tpu_custom_call.1} parent=0
    #allocation2 [shape = 'u8[512]{0}', space=smem, size = 0x200, scoped, tag = 'input window, operand 0, single buffered']
    #allocation3 [shape = 's32[1]{0}', space=sflag, size = 0x4, scoped, tag = 'scoped memory for tpu_custom_call.1']
    #allocation4 [shape = 's32[1]{0}', space=sflag, size = 0x4, scoped, tag = 'scoped memory for tpu_custom_call.1']
    #allocation5 [shape = 'u8[512]{0}', space=vmem, size = 0x400, scoped, tag = 'output window, operand 0, single buffered']
    %7 = vsyncpa [#allocation4], 0
    %8 = vsyncpa [#allocation3], 0
    // Predicated region
    $region2: #{tpu_custom_call.1} parent=1 // pred_check
      _
    $region3: #{tpu_custom_call.1} parent=1 // pred_check_branch
      %10 = sbr.rel (0) target = $region5
    $region4: #{tpu_custom_call.1} parent=1 // pred_region
      %s12 = ssub.s32 16, 16
      %13 = vsyncadd [#allocation4], %s12
      %16 = dma.hbm_to_smem %s0, 16, [#allocation2], [#allocation4]
    $region5: #{tpu_custom_call.1} parent=1 // pred_fallthru
      _
    // Predicated region
    $region6: #{tpu_custom_call.1} parent=1 // pred_check
      _
    $region7: #{tpu_custom_call.1} parent=1 // pred_check_branch
      %18 = sbr.rel (0) target = $region9
    $region8: #{tpu_custom_call.1} parent=1 // pred_region
      _
    $region9: #{tpu_custom_call.1} parent=1 // pred_fallthru
      _
    // Predicated region
    $region10: #{tpu_custom_call.1} parent=1 // pred_check
      _
    $region11: #{tpu_custom_call.1} parent=1 // pred_check_branch
      %20 = sbr.rel (0) target = $region13
    $region12: #{tpu_custom_call.1} parent=1 // pred_region
      %21 = dma.done [#allocation4], 16
    $region13: #{tpu_custom_call.1} parent=1 // pred_fallthru
      _
    %22 = sfence
    %s23 = sld [smem:[#allocation2]]
    %s24 = sld [smem:[#allocation2 + $0x1]]
    %v25 = vld [vmem:[%s1] sm:$0x1]
    %v26 = vstv %s24
    %v27 = vmul.f32 %v26, %v25
    %v28 = vstv %s23
    %v29 = vadd.f32 %v28, %v27
    %30 = vst [vmem:[#allocation5] sm:$0x1] %v29
    // Predicated region
    $region14: #{tpu_custom_call.1} parent=1 // pred_check
      _
    $region15: #{tpu_custom_call.1} parent=1 // pred_check_branch
      %32 = sbr.rel (0) target = $region17
    $region16: #{tpu_custom_call.1} parent=1 // pred_region
      %s34 = ssub.s32 16, 16
      %35 = vsyncadd [#allocation3], %s34
      %s37 = sshll.u32 [#allocation5], 4
      %s38 = int_to_ptr.vmem [resolvable:$true] %s37
      %40 = dma.vmem_to_hbm [thread:$0]  %s38, 16, %s2, [#allocation3]
    $region17: #{tpu_custom_call.1} parent=1 // pred_fallthru
      _
    // Predicated region
    $region18: #{tpu_custom_call.1} parent=1 // pred_check
      _
    $region19: #{tpu_custom_call.1} parent=1 // pred_check_branch
      %42 = sbr.rel (0) target = $region21
    $region20: #{tpu_custom_call.1} parent=1 // pred_region
      %43 = dma.done [#allocation3], 16
    $region21: #{tpu_custom_call.1} parent=1 // pred_fallthru
      _
    %44 = vsyncpa [#allocation3], 1
    %45 = vsyncpa [#allocation4], 1

</llo_original>
